<compile_context>
chip_gen: v5e
topology: v5e:2x2
jax: 0.10.0
libtpu: 0.0.40
codegen_flags: <defaults>
</compile_context>

<pallas_src>
import jax
import jax.numpy as jnp
from jax.experimental import pallas as pl
from jax.experimental.pallas import tpu as pltpu


def _round_up(v, m):
    return ((v + m - 1) // m) * m


def _rgcn_kernel(nblk_ref, blk_r_ref, blk_k_ref,            # scalar prefetch (SMEM)
                 xd_ref, xs_ref, a_ref, w_ref, inv_ref, root_ref, bias_ref,
                 o_ref):
    """Grid = (dst_tiles, steps); `steps` walks this dst tile's compacted list
    of nonzero (relation, src_tile) adjacency blocks.

    xd_ref:   (TM, DP)    bf16  x rows of this dst tile (root/self term)
    xs_ref:   (TK, DP)    bf16  x rows of the current block's src tile
    a_ref:    (1, TM, TK) int8  edge-count block for (relation, src_tile)
    w_ref:    (1, DP, DP) bf16  relation weight of the current block
    inv_ref:  (1, TM, 1)  f32   1/deg (mean normalization) for (rel, dst rows)
    root_ref: (DP, DP)    bf16
    bias_ref: (1, DP)     f32
    o_ref:    (TM, DP)    f32   output tile, used directly as the accumulator
    """
    i = pl.program_id(0)
    s = pl.program_id(1)

    # Root/self term + bias, once per dst tile.
    @pl.when(s == 0)
    def _():
        o_ref[...] = (
            jnp.dot(xd_ref[...], root_ref[...], preferred_element_type=jnp.float32)
            + bias_ref[...])

    # One nonzero adjacency block:  out += ((counts @ x_src) * 1/deg) @ W_r.
    # Steps past this tile's block count repeat the previous block indices
    # (so their DMAs are skipped) and are masked off here.
    @pl.when(s < nblk_ref[i])
    def _():
        agg = jnp.dot(a_ref[0].astype(jnp.bfloat16), xs_ref[...],
                      preferred_element_type=jnp.float32)
        agg = agg * inv_ref[0]
        o_ref[...] += jnp.dot(agg.astype(jnp.bfloat16), w_ref[0],
                              preferred_element_type=jnp.float32)


def _pick_tiles(n):
    """dst-row tile TM and src-col tile TK.  TK is a multiple of TM (and of
    128, the lane dim of the A blocks); at least 2 dst tiles so both v7x
    TensorCores get work; larger tiles for large N (per tile-sweep data)."""
    if n >= 2048:
        return 512, 1024
    if n >= 1024:
        return 512, 512
    if n >= 512:
        return 256, 512
    if n >= 256:
        return 128, 256
    npad = _round_up(max(n, 2), 128)
    return npad // 2, npad


def rgcn_conv_pallas(x, counts, weight, root, bias):
    """x: [N, D] f32, counts: [R, N, N] integer edge multiplicities,
    weight: [R, D, D], root: [D, D], bias: [D]  ->  out: [N, D] f32.

    out = x @ root + bias + sum_r (counts[r] / deg[r]) @ x @ W_r   (mean aggr)
    """
    N, D = x.shape
    R = counts.shape[0]
    f32, bf16 = jnp.float32, jnp.bfloat16

    if R == 0:  # only the root/self term remains
        return x.astype(f32) @ root.astype(f32) + bias.astype(f32)[None, :]

    DP = _round_up(max(D, 128), 128)          # lane-dense feature dim
    TM, TK = _pick_tiles(N)
    NP = _round_up(N, TK)                     # TK multiple of TM -> TM | NP
    GI, KT = NP // TM, NP // TK

    # ---- padded operands ---------------------------------------------------
    # A kept as int8 edge counts (half the HBM bytes of bf16, exact); the mean
    # normalization is an exact f32 per-(relation, dst-row) scale.
    # TODO(synk): int8 wraps for >127 parallel edges of one (rel, i, j) triple.
    a_p = jnp.zeros((R, NP, NP), jnp.int8).at[:, :N, :N].set(counts.astype(jnp.int8))
    deg = counts.sum(axis=2).astype(f32)                              # [R, N]
    inv = jnp.where(deg > 0, 1.0 / jnp.maximum(deg, 1.0), 0.0)
    inv_p = jnp.zeros((R, NP, 1), f32).at[:, :N, 0].set(inv)
    x_p = jnp.zeros((NP, DP), bf16).at[:N, :D].set(x.astype(bf16))
    w_p = jnp.zeros((R, DP, DP), bf16).at[:, :D, :D].set(weight.astype(bf16))
    root_p = jnp.zeros((DP, DP), bf16).at[:D, :D].set(root.astype(bf16))
    bias_p = jnp.zeros((1, DP), f32).at[0, :D].set(bias.astype(f32))

    # ---- compacted nonzero-block lists (scalar prefetch) --------------------
    # Per dst tile: the (relation, src_tile) pairs whose adjacency block holds
    # any edge, relation-major (so the W block index rarely changes).  Empty
    # blocks are never DMA'd: padded steps repeat the previous block index and
    # Pallas skips the copy when the block index is unchanged.
    occ = (a_p.reshape(R, GI, TM, KT, TK) != 0).any(axis=(2, 4))      # [R,GI,KT]
    occ = jnp.transpose(occ, (1, 0, 2)).reshape(GI, R * KT)           # [GI,R*KT]
    nblk = occ.sum(axis=1).astype(jnp.int32)                          # [GI]
    keys = jnp.sort(jnp.where(occ, jnp.arange(R * KT, dtype=jnp.int32),
                              jnp.int32(R * KT)), axis=1)             # valid first
    try:
        # Concrete (eager) edge data: shrink the step axis to the true max.
        S = max(int(jnp.max(nblk)), 1)
    except jax.errors.ConcretizationTypeError:
        # Traced under jit: fall back to the dense worst case (empty-block
        # DMAs are still skipped, only the per-step loop overhead remains).
        S = R * KT
    last = jnp.take_along_axis(keys, jnp.maximum(nblk - 1, 0)[:, None], axis=1)[:, 0]
    last = jnp.where(nblk > 0, last, 0)
    keys = keys[:, :S]
    keys = jnp.where(keys >= R * KT, last[:, None], keys)
    blk_r = (keys // KT).astype(jnp.int32)
    blk_k = (keys % KT).astype(jnp.int32)

    # ---- VMEM budget from actual tile footprint (cap at v7x's 64 MiB) ------
    vmem_bytes = (2 * TM * DP * 2        # xd bf16, double buffered
                  + 2 * TK * DP * 2      # xs bf16
                  + 2 * TM * TK          # A int8
                  + 2 * 2 * DP * DP * 2  # W + root bf16
                  + 2 * TM * 4           # invdeg f32
                  + 2 * DP * 4           # bias f32
                  + 2 * TM * DP * 4)     # out f32
    vmem_limit = int(min(64 * 2**20, max(32 * 2**20, 2 * vmem_bytes)))

    out = pl.pallas_call(
        _rgcn_kernel,
        out_shape=jax.ShapeDtypeStruct((NP, DP), f32),
        grid_spec=pltpu.PrefetchScalarGridSpec(
            num_scalar_prefetch=3,
            grid=(GI, S),
            in_specs=[
                # x (dst rows): block index only changes with i -> one DMA/tile.
                pl.BlockSpec((TM, DP), lambda i, s, nb, br, bk: (i, 0)),
                # x (src rows of the current block).
                pl.BlockSpec((TK, DP), lambda i, s, nb, br, bk: (bk[i, s], 0)),
                # A edge-count block of the current (relation, src_tile).
                pl.BlockSpec((1, TM, TK),
                             lambda i, s, nb, br, bk: (br[i, s], i, bk[i, s])),
                # Relation weight of the current block (relation-major order
                # -> rarely re-fetched).
                pl.BlockSpec((1, DP, DP),
                             lambda i, s, nb, br, bk: (br[i, s], 0, 0)),
                # 1/deg mean-normalization column for (relation, dst rows).
                pl.BlockSpec((1, TM, 1),
                             lambda i, s, nb, br, bk: (br[i, s], i, 0)),
                # Root weight and bias (grid-invariant).
                pl.BlockSpec((DP, DP), lambda i, s, nb, br, bk: (0, 0)),
                pl.BlockSpec((1, DP), lambda i, s, nb, br, bk: (0, 0)),
            ],
            out_specs=pl.BlockSpec((TM, DP), lambda i, s, nb, br, bk: (i, 0)),
        ),
        compiler_params=pltpu.CompilerParams(
            dimension_semantics=("parallel", "arbitrary"),
            vmem_limit_bytes=vmem_limit,
        ),
    )(nblk, blk_r, blk_k, x_p, x_p, a_p, w_p, inv_p, root_p, bias_p)

    return out[:N, :D]


def build_relational_edge_counts(edge_index, edge_type, num_nodes, num_rels):
    """counts[r, i, j] = number of edges j->i with relation r.
    # TODO(synk): sparse/segmented (CSR per relation) build to avoid the dense
    # O(R*N^2) materialization for large realistic graphs."""
    src, dst = edge_index[0], edge_index[1]
    counts = jnp.zeros((num_rels, num_nodes, num_nodes), jnp.int32)
    return counts.at[edge_type, dst, src].add(1)


def gnn_rgcn_el_conv_forward(params, inp):
    """Mirrors GNNRGCNElConv.forward (gnn_model='rgcn'):
    returns (RGCNConv(x, edge_index, edge_type), edge_index, edge_type).

    Intentionally NOT wrapped in jax.jit at the top level: with concrete edge
    data the sparse block lists shrink the kernel's step axis to the true max
    nonzero-block count.  (It still works when traced; it then falls back to
    the dense worst-case grid while still skipping empty-block DMAs.)
    """
    x, edge_index, edge_type = inp
    N = x.shape[0]
    R = params["weight"].shape[0]
    counts = build_relational_edge_counts(edge_index, edge_type, N, R)
    out = rgcn_conv_pallas(x, counts, params["weight"], params["root"], params["bias"])
    return out, edge_index, edge_type


def glorot(key, shape):
    fan_in, fan_out = shape[-2], shape[-1]
    limit = jnp.sqrt(6.0 / (fan_in + fan_out))
    return jax.random.uniform(key, shape, jnp.float32, -limit, limit)


def _reference(x, counts, weight, root, bias):
    deg = counts.sum(axis=2, keepdims=True).astype(jnp.float32)
    adj = jnp.where(deg > 0, counts.astype(jnp.float32) / jnp.maximum(deg, 1.0), 0.0)
    out = x @ root + bias[None, :]
    for r in range(weight.shape[0]):
        out = out + adj[r] @ (x @ weight[r])
    return out


if __name__ == "__main__":
    # Small synthetic problem consistent with the module:
    #   node_emb_dim = 64, num_rels = 4, N = 64 nodes, E = 256 edges.
    N, D, R, E = 64, 64, 4, 256

    key = jax.random.PRNGKey(0)
    kx, ks, kd, kt, kw, kr = jax.random.split(key, 6)

    x = jax.random.normal(kx, (N, D), jnp.float32)
    src = jax.random.randint(ks, (E,), 0, N, jnp.int32)
    dst = jax.random.randint(kd, (E,), 0, N, jnp.int32)
    edge_index = jnp.stack([src, dst], axis=0)          # [2, E]
    edge_type = jax.random.randint(kt, (E,), 0, R, jnp.int32)

    # Parameters per RGCNConv(in=D, out=D, num_relations=R): glorot weights,
    # zero bias.
    params = {
        "weight": glorot(kw, (R, D, D)),
        "root": glorot(kr, (D, D)),
        "bias": jnp.zeros((D,), jnp.float32),
    }

    out, ei, et = gnn_rgcn_el_conv_forward(params, (x, edge_index, edge_type))
    out = jax.block_until_ready(out)

    # Reference of the same math: exact f32 mean normalization (the kernel's
    # int8 counts + f32 1/deg are exact), with the same bf16 rounding of the
    # x / W / root MXU inputs.
    counts = build_relational_edge_counts(edge_index, edge_type, N, R)
    ref = _reference(
        x.astype(jnp.bfloat16).astype(jnp.float32),
        counts,
        params["weight"].astype(jnp.bfloat16).astype(jnp.float32),
        params["root"].astype(jnp.bfloat16).astype(jnp.float32),
        params["bias"],
    )
    err = float(jnp.max(jnp.abs(out - ref)))
    assert jnp.allclose(out, ref, atol=5e-2, rtol=5e-2), f"mismatch vs reference: {err}"

    print("KERNEL_OK")
</pallas_src>

<mosaic_0001>
module attributes {stable_mosaic.version = 11 : i64} {
  func.func @_rgcn_kernel(%arg0: i32, %arg1: i32, %arg2: memref<2xi32, #tpu.memory_space<smem>>, %arg3: memref<2x4xi32, #tpu.memory_space<smem>>, %arg4: memref<2x4xi32, #tpu.memory_space<smem>>, %arg5: memref<64x128xbf16, #tpu.memory_space<vmem>>, %arg6: memref<128x128xbf16, #tpu.memory_space<vmem>>, %arg7: memref<1x64x128xi8, #tpu.memory_space<vmem>>, %arg8: memref<1x128x128xbf16, #tpu.memory_space<vmem>>, %arg9: memref<1x64x1xf32, #tpu.memory_space<vmem>>, %arg10: memref<128x128xbf16, #tpu.memory_space<vmem>>, %arg11: memref<1x128xf32, #tpu.memory_space<vmem>>, %arg12: memref<64x128xf32, #tpu.memory_space<vmem>>) attributes {dimension_semantics = [#tpu.dimension_semantics<parallel>, #tpu.dimension_semantics<arbitrary>], iteration_bounds = array<i64: 2, 4>, scalar_prefetch = 3 : i64, scratch_operands = 0 : i64, tpu.core_type = #tpu.core_type<tc>, window_params = [{transform_indices = @transform_0, window_bounds = array<i64: 64, 128>}, {transform_indices = @transform_1, window_bounds = array<i64: 128, 128>}, {transform_indices = @transform_2, window_bounds = array<i64: 1, 64, 128>}, {transform_indices = @transform_3, window_bounds = array<i64: 1, 128, 128>}, {transform_indices = @transform_4, window_bounds = array<i64: 1, 64, 1>}, {pipeline_mode = #tpu.pipeline_mode<synchronous>, transform_indices = @transform_5, window_bounds = array<i64: 128, 128>}, {pipeline_mode = #tpu.pipeline_mode<synchronous>, transform_indices = @transform_6, window_bounds = array<i64: 1, 128>}, {transform_indices = @transform_7, window_bounds = array<i64: 64, 128>}]} {
    %c0_i32 = arith.constant 0 : i32
    %0 = arith.cmpi eq, %arg1, %c0_i32 : i32
    %1 = arith.extui %0 : i1 to i32
    %c0_i32_0 = arith.constant 0 : i32
    %2 = arith.cmpi ne, %1, %c0_i32_0 : i32
    scf.if %2 {
      %c0 = arith.constant 0 : index
      %c0_2 = arith.constant 0 : index
      %8 = vector.load %arg5[%c0, %c0_2] : memref<64x128xbf16, #tpu.memory_space<vmem>>, vector<64x128xbf16>
      %c0_3 = arith.constant 0 : index
      %c0_4 = arith.constant 0 : index
      %9 = vector.load %arg10[%c0_3, %c0_4] : memref<128x128xbf16, #tpu.memory_space<vmem>>, vector<128x128xbf16>
      %cst = arith.constant dense<0.000000e+00> : vector<64x128xf32>
      %10 = tpu.matmul %8, %9, %cst {dimension_numbers = #tpu.dot_dimension_numbers<[1], [0], [0], [1], [0, 0, 1, 1], [], []>} : vector<64x128xbf16>, vector<128x128xbf16>, vector<64x128xf32> -> vector<64x128xf32>
      %c0_5 = arith.constant 0 : index
      %c0_6 = arith.constant 0 : index
      %11 = vector.load %arg11[%c0_5, %c0_6] : memref<1x128xf32, #tpu.memory_space<vmem>>, vector<1x128xf32>
      %12 = vector.broadcast %11 : vector<1x128xf32> to vector<64x128xf32>
      %13 = arith.addf %10, %12 : vector<64x128xf32>
      %c0_7 = arith.constant 0 : index
      %c0_8 = arith.constant 0 : index
      %14 = vector.load %arg12[%c0_7, %c0_8] : memref<64x128xf32, #tpu.memory_space<vmem>>, vector<64x128xf32>
      tpu.vector_store %arg12[%c0_7, %c0_8], %13 {strides = array<i32>} : memref<64x128xf32, #tpu.memory_space<vmem>>, vector<64x128xf32>,
    } else {
    }
    %3 = arith.index_cast %arg0 : i32 to index
    %4 = memref.load %arg2[%3] : memref<2xi32, #tpu.memory_space<smem>>
    %5 = arith.cmpi slt, %arg1, %4 : i32
    %6 = arith.extui %5 : i1 to i32
    %c0_i32_1 = arith.constant 0 : i32
    %7 = arith.cmpi ne, %6, %c0_i32_1 : i32
    scf.if %7 {
      %c0 = arith.constant 0 : index
      %c0_2 = arith.constant 0 : index
      %c0_3 = arith.constant 0 : index
      %8 = vector.load %arg7[%c0, %c0_2, %c0_3] : memref<1x64x128xi8, #tpu.memory_space<vmem>>, vector<1x64x128xi8>
      %9 = vector.shape_cast %8 : vector<1x64x128xi8> to vector<64x128xi8>
      %10 = arith.sitofp %9 : vector<64x128xi8> to vector<64x128xbf16>
      %c0_4 = arith.constant 0 : index
      %c0_5 = arith.constant 0 : index
      %11 = vector.load %arg6[%c0_4, %c0_5] : memref<128x128xbf16, #tpu.memory_space<vmem>>, vector<128x128xbf16>
      %cst = arith.constant dense<0.000000e+00> : vector<64x128xf32>
      %12 = tpu.matmul %10, %11, %cst {dimension_numbers = #tpu.dot_dimension_numbers<[1], [0], [0], [1], [0, 0, 1, 1], [], []>} : vector<64x128xbf16>, vector<128x128xbf16>, vector<64x128xf32> -> vector<64x128xf32>
      %c0_6 = arith.constant 0 : index
      %c0_7 = arith.constant 0 : index
      %c0_8 = arith.constant 0 : index
      %13 = vector.load %arg9[%c0_6, %c0_7, %c0_8] : memref<1x64x1xf32, #tpu.memory_space<vmem>>, vector<1x64x1xf32>
      %14 = vector.shape_cast %13 : vector<1x64x1xf32> to vector<64x1xf32>
      %15 = vector.broadcast %14 : vector<64x1xf32> to vector<64x128xf32>
      %16 = arith.mulf %12, %15 : vector<64x128xf32>
      %c0_9 = arith.constant 0 : index
      %c0_10 = arith.constant 0 : index
      %17 = vector.load %arg12[%c0_9, %c0_10] : memref<64x128xf32, #tpu.memory_space<vmem>>, vector<64x128xf32>
      %18 = arith.truncf %16 : vector<64x128xf32> to vector<64x128xbf16>
      %c0_11 = arith.constant 0 : index
      %c0_12 = arith.constant 0 : index
      %c0_13 = arith.constant 0 : index
      %19 = vector.load %arg8[%c0_11, %c0_12, %c0_13] : memref<1x128x128xbf16, #tpu.memory_space<vmem>>, vector<1x128x128xbf16>
      %20 = vector.shape_cast %19 : vector<1x128x128xbf16> to vector<128x128xbf16>
      %cst_14 = arith.constant dense<0.000000e+00> : vector<64x128xf32>
      %21 = tpu.matmul %18, %20, %cst_14 {dimension_numbers = #tpu.dot_dimension_numbers<[1], [0], [0], [1], [0, 0, 1, 1], [], []>} : vector<64x128xbf16>, vector<128x128xbf16>, vector<64x128xf32> -> vector<64x128xf32>
      %22 = arith.addf %17, %21 : vector<64x128xf32>
      %c0_15 = arith.constant 0 : index
      %c0_16 = arith.constant 0 : index
      %23 = vector.load %arg12[%c0_15, %c0_16] : memref<64x128xf32, #tpu.memory_space<vmem>>, vector<64x128xf32>
      tpu.vector_store %arg12[%c0_15, %c0_16], %22 {strides = array<i32>} : memref<64x128xf32, #tpu.memory_space<vmem>>, vector<64x128xf32>,
    } else {
    }
    return
  }
  func.func @transform_0(%arg0: i32, %arg1: i32, %arg2: memref<2xi32, #tpu.memory_space<smem>>, %arg3: memref<2x4xi32, #tpu.memory_space<smem>>, %arg4: memref<2x4xi32, #tpu.memory_space<smem>>) -> (i32, i32) {
    %c0_i32 = arith.constant 0 : i32
    %c0_i32_0 = arith.constant 0 : i32
    return %arg0, %c0_i32 : i32, i32
  }
  func.func @transform_1(%arg0: i32, %arg1: i32, %arg2: memref<2xi32, #tpu.memory_space<smem>>, %arg3: memref<2x4xi32, #tpu.memory_space<smem>>, %arg4: memref<2x4xi32, #tpu.memory_space<smem>>) -> (i32, i32) {
    %0 = arith.index_cast %arg0 : i32 to index
    %1 = arith.index_cast %arg1 : i32 to index
    %2 = memref.load %arg4[%0, %1] : memref<2x4xi32, #tpu.memory_space<smem>>
    %c0_i32 = arith.constant 0 : i32
    %c0_i32_0 = arith.constant 0 : i32
    return %2, %c0_i32 : i32, i32
  }
  func.func @transform_2(%arg0: i32, %arg1: i32, %arg2: memref<2xi32, #tpu.memory_space<smem>>, %arg3: memref<2x4xi32, #tpu.memory_space<smem>>, %arg4: memref<2x4xi32, #tpu.memory_space<smem>>) -> (i32, i32, i32) {
    %0 = arith.index_cast %arg0 : i32 to index
    %1 = arith.index_cast %arg1 : i32 to index
    %2 = memref.load %arg3[%0, %1] : memref<2x4xi32, #tpu.memory_space<smem>>
    %3 = arith.index_cast %arg0 : i32 to index
    %4 = arith.index_cast %arg1 : i32 to index
    %5 = memref.load %arg4[%3, %4] : memref<2x4xi32, #tpu.memory_space<smem>>
    %c0_i32 = arith.constant 0 : i32
    return %2, %arg0, %5 : i32, i32, i32
  }
  func.func @transform_3(%arg0: i32, %arg1: i32, %arg2: memref<2xi32, #tpu.memory_space<smem>>, %arg3: memref<2x4xi32, #tpu.memory_space<smem>>, %arg4: memref<2x4xi32, #tpu.memory_space<smem>>) -> (i32, i32, i32) {
    %0 = arith.index_cast %arg0 : i32 to index
    %1 = arith.index_cast %arg1 : i32 to index
    %2 = memref.load %arg3[%0, %1] : memref<2x4xi32, #tpu.memory_space<smem>>
    %c0_i32 = arith.constant 0 : i32
    %c0_i32_0 = arith.constant 0 : i32
    %c0_i32_1 = arith.constant 0 : i32
    return %2, %c0_i32, %c0_i32_0 : i32, i32, i32
  }
  func.func @transform_4(%arg0: i32, %arg1: i32, %arg2: memref<2xi32, #tpu.memory_space<smem>>, %arg3: memref<2x4xi32, #tpu.memory_space<smem>>, %arg4: memref<2x4xi32, #tpu.memory_space<smem>>) -> (i32, i32, i32) {
    %0 = arith.index_cast %arg0 : i32 to index
    %1 = arith.index_cast %arg1 : i32 to index
    %2 = memref.load %arg3[%0, %1] : memref<2x4xi32, #tpu.memory_space<smem>>
    %c0_i32 = arith.constant 0 : i32
    %c0_i32_0 = arith.constant 0 : i32
    return %2, %arg0, %c0_i32 : i32, i32, i32
  }
  func.func @transform_5(%arg0: i32, %arg1: i32, %arg2: memref<2xi32, #tpu.memory_space<smem>>, %arg3: memref<2x4xi32, #tpu.memory_space<smem>>, %arg4: memref<2x4xi32, #tpu.memory_space<smem>>) -> (i32, i32) {
    %c0_i32 = arith.constant 0 : i32
    %c0_i32_0 = arith.constant 0 : i32
    %c0_i32_1 = arith.constant 0 : i32
    return %c0_i32, %c0_i32_0 : i32, i32
  }
  func.func @transform_6(%arg0: i32, %arg1: i32, %arg2: memref<2xi32, #tpu.memory_space<smem>>, %arg3: memref<2x4xi32, #tpu.memory_space<smem>>, %arg4: memref<2x4xi32, #tpu.memory_space<smem>>) -> (i32, i32) {
    %c0_i32 = arith.constant 0 : i32
    %c0_i32_0 = arith.constant 0 : i32
    %c0_i32_1 = arith.constant 0 : i32
    return %c0_i32, %c0_i32_0 : i32, i32
  }
  func.func @transform_7(%arg0: i32, %arg1: i32, %arg2: memref<2xi32, #tpu.memory_space<smem>>, %arg3: memref<2x4xi32, #tpu.memory_space<smem>>, %arg4: memref<2x4xi32, #tpu.memory_space<smem>>) -> (i32, i32) {
    %c0_i32 = arith.constant 0 : i32
    %c0_i32_0 = arith.constant 0 : i32
    return %arg0, %c0_i32 : i32, i32
  }
}

</mosaic_0001>

<llo_original>
// kernel: tpu_custom_call.1
$region0: #{tpu_custom_call.1}
  #allocation0 [shape = 'u32[]', space=smem, size = 0x4, offset = 0x4, fixed_abs, tag = 'smem constant byte address 0x4 - core index']
  #allocation1 [shape = 'u32[72,128]{1,0:T(1,128)}', space=vmem, size = 0x9000, scoped, tag = 'internal scratch']
  #allocation2 [shape = 's32[1]{0}', space=sflag, size = 0x4, scoped, tag = 'scoped memory for tpu_custom_call.1']
  #allocation3 [shape = 'u8[512]{0}', space=smem, size = 0x200, scoped, tag = 'prefetched SMEM operand 0']
  #allocation4 [shape = 'u8[1024]{0}', space=smem, size = 0x400, scoped, tag = 'prefetched SMEM operand 1']
  #allocation5 [shape = 'u8[1024]{0}', space=smem, size = 0x400, scoped, tag = 'prefetched SMEM operand 2']
  %s0 = inlined_call_operand.hbm [shape: s32[2], index: 0, kind: input, shape index: {}]
  %s1 = inlined_call_operand.vmem [shape: s32[2,4], index: 1, kind: input, shape index: {}]
  %s2 = inlined_call_operand.vmem [shape: s32[2,4], index: 2, kind: input, shape index: {}]
  %s3 = inlined_call_operand.vmem [shape: bf16[128,128], index: 3, kind: input, shape index: {}]
  %s4 = inlined_call_operand.vmem [shape: bf16[128,128], index: 4, kind: input, shape index: {}]
  %s5 = inlined_call_operand.vmem [shape: s8[4,128,128], index: 5, kind: input, shape index: {}]
  %s6 = inlined_call_operand.vmem [shape: bf16[4,128,128], index: 6, kind: input, shape index: {}]
  %s7 = inlined_call_operand.vmem [shape: f32[4,128,1], index: 7, kind: input, shape index: {}]
  %s8 = inlined_call_operand.hbm [shape: bf16[128,128], index: 8, kind: input, shape index: {}]
  %s9 = inlined_call_operand.vmem [shape: f32[1,128], index: 9, kind: input, shape index: {}]
  %s10 = inlined_call_operand.hbm [shape: f32[128,128], index: 10, kind: output, shape index: {}]
  %s11 = sld [smem:[#allocation0]]
  $region73: #{tpu_custom_call.1} parent=0
    _
  %s13 = ssub.s32 1, %s11
  %s14 = scalar_select 0, %s13, %s11
  %s16 = sshll.u32 %s0, 4
  %s17 = int_to_ptr.hbm [resolvable:$true] %s16
  %19 = dma.hbm_to_smem %s17, 16, [#allocation3], [#allocation2]
  %s21 = sshll.u32 %s1, 4
  %s22 = int_to_ptr.vmem [resolvable:$true] %s21
  %24 = dma.vmem_to_smem %s22, 32, [#allocation4], [#allocation2]
  %s26 = sshll.u32 %s2, 4
  %s27 = int_to_ptr.vmem [resolvable:$true] %s26
  %29 = dma.vmem_to_smem %s27, 32, [#allocation5], [#allocation2]
  %31 = dma.done [#allocation2], 80
  %32 = sfence
  $region1: #{tpu_custom_call.1} parent=0
    #allocation6 [shape = 'u8[32768]{0}', space=vmem, size = 0x8000, scoped, tag = 'input window, operand 8, single buffered']
    #allocation7 [shape = 's32[2]{0}', space=sflag, size = 0x8, scoped, tag = 'scoped memory for tpu_custom_call.1']
    #allocation8 [shape = 's32[2]{0}', space=sflag, size = 0x8, scoped, tag = 'scoped memory for tpu_custom_call.1']
    #allocation9 [shape = 'u8[65536]{0}', space=vmem, size = 0x10000, scoped, tag = 'output window, operand 0']
    %33 = vsyncpa [#allocation7], 0
    %34 = vsyncpa [#allocation8], 0
    %s35 = scalar_lea.sflag [#allocation8], 1
    %36 = vsyncpa %s35, 0
    loop: start=0, step=1, limit=10
    $region2: #{tpu_custom_call.1} parent=1 // loop_pre_header
      _
    $region3: #{tpu_custom_call.1} parent=1 // loop_header
      %s38 = sphi 0, %s42
      %p39 = scmp.ge.s32.totalorder %s38, 10
      %s45 = sphi 0, %s57
      %s46 = sphi 0, %s53
      %s47 = sphi 0, %s45
      %s48 = sphi 0, %s46
      %s49 = sphi 0, %s47
      %s50 = sphi 0, %s48
      %s60 = sphi 0, %s62
      %s63 = sphi 0, %s60
      %s64 = sphi 0, %s63
      %s80 = sphi 0, %s64
      %s102 = sphi 0, %s104
      %s105 = sphi 0, %s102
      %s106 = sphi 0, %s105
      %s122 = sphi 0, %s106
      %s150 = sphi 0, %s152
      %s153 = sphi 0, %s150
      %s154 = sphi 0, %s153
      %s170 = sphi 0, %s154
      %s192 = sphi 0, %s194
      %s195 = sphi 0, %s192
      %s196 = sphi 0, %s195
      %s212 = sphi 0, %s196
      %s236 = sphi 0, %s238
      %s239 = sphi 0, %s236
      %s240 = sphi 0, %s239
      %s256 = sphi 0, %s240
      %s260 = sphi 0, %s260
      %s262 = sphi 0, %s260
      %s263 = sphi 0, %s262
      %s277 = sphi 0, %s263
      %s281 = sphi 0, %s281
      %s283 = sphi 0, %s281
      %s284 = sphi 0, %s283
      %s298 = sphi 0, %s284
      %s304 = sphi 0, %s306
      %s307 = sphi 0, %s304
      %s308 = sphi 0, %s307
      %s324 = sphi 0, %s308
    $region4: #{tpu_custom_call.1} parent=1 // loop_header_branch
      %41 = sbr.rel (%p39) target = $region8
    $region5: #{tpu_custom_call.1} parent=1 // loop_body
      %s43 = ssub.s32 %s38, 1
      %s44 = ssub.s32 %s38, 2
      %s51 = sadd.s32 1, %s46
      %p52 = scmp.ge.s32.totalorder %s51, 4
      %s53 = scalar_select %p52, 0, %s51
      %s54 = sadd.s32 1, %s45
      %s55 = scalar_select %p52, %s54, %s45
      %p56 = scmp.ge.s32.totalorder %s55, 2
      %s57 = scalar_select %p56, 0, %s55
      %s58 = ssub.s32 %s45, %s57
      %p59 = scmp.eq.s32.totalorder %s58, 0
      %s61 = sadd.s32 %s60, 1
      %s62 = scalar_select %p59, %s60, %s61
      %p65 = pneg %p59
      %p66 = scmp.eq.s32.totalorder %s38, 7
      %p67 = por %p65, %p66
      %p68 = scmp.ne.s32.totalorder %s60, %s63
      %p69 = scmp.eq.s32.totalorder %s38, 0
      %p70 = por %p68, %p69
      %p71 = scmp.ne.s32.totalorder %s60, %s63
      %p72 = scmp.eq.s32.totalorder %s43, 7
      %p73 = por %p71, %p72
      %p74 = scmp.ne.s32.totalorder %s63, %s64
      %p75 = scmp.eq.s32.totalorder %s43, 0
      %p76 = por %p74, %p75
      %p77 = scmp.ne.s32.totalorder %s63, %s64
      %p78 = scmp.eq.s32.totalorder %s44, 7
      %p79 = por %p77, %p78
      %p81 = scmp.ne.s32.totalorder %s64, %s80
      %p82 = scmp.eq.s32.totalorder %s44, 0
      %p83 = por %p81, %p82
      %s84 = sshra.s32 %s46, 7
      %s85 = sand.u32 %s46, 127
      %s86 = sadd.s32 %s84, %s45
      %s87 = smul.u32 %s86, 128
      %s88 = sshra.s32 %s46, 7
      %s89 = sand.u32 %s46, 127
      %s90 = sadd.s32 %s87, %s89
      %s91 = sld [smem:[#allocation5 + %s90]]
      %s92 = sshra.s32 %s53, 7
      %s93 = sand.u32 %s53, 127
      %s94 = sadd.s32 %s92, %s57
      %s95 = smul.u32 %s94, 128
      %s96 = sshra.s32 %s53, 7
      %s97 = sand.u32 %s53, 127
      %s98 = sadd.s32 %s95, %s97
      %s99 = sld [smem:[#allocation5 + %s98]]
      %s100 = ssub.s32 %s91, %s99
      %p101 = scmp.eq.s32.totalorder %s100, 0
      %s103 = sadd.s32 %s102, 1
      %s104 = scalar_select %p101, %s102, %s103
      %p107 = pneg %p101
      %p108 = scmp.eq.s32.totalorder %s38, 7
      %p109 = por %p107, %p108
      %p110 = scmp.ne.s32.totalorder %s102, %s105
      %p111 = scmp.eq.s32.totalorder %s38, 0
      %p112 = por %p110, %p111
      %p113 = scmp.ne.s32.totalorder %s102, %s105
      %p114 = scmp.eq.s32.totalorder %s43, 7
      %p115 = por %p113, %p114
      %p116 = scmp.ne.s32.totalorder %s105, %s106
      %p117 = scmp.eq.s32.totalorder %s43, 0
      %p118 = por %p116, %p117
      %p119 = scmp.ne.s32.totalorder %s105, %s106
      %p120 = scmp.eq.s32.totalorder %s44, 7
      %p121 = por %p119, %p120
      %p123 = scmp.ne.s32.totalorder %s106, %s122
      %p124 = scmp.eq.s32.totalorder %s44, 0
      %p125 = por %p123, %p124
      %s126 = sshra.s32 %s46, 7
      %s127 = sand.u32 %s46, 127
      %s128 = sadd.s32 %s126, %s45
      %s129 = smul.u32 %s128, 128
      %s130 = sshra.s32 %s46, 7
      %s131 = sand.u32 %s46, 127
      %s132 = sadd.s32 %s129, %s131
      %s133 = sld [smem:[#allocation4 + %s132]]
      %s134 = sld [smem:[#allocation5 + %s132]]
      %s135 = sshra.s32 %s53, 7
      %s136 = sand.u32 %s53, 127
      %s137 = sadd.s32 %s135, %s57
      %s138 = smul.u32 %s137, 128
      %s139 = sshra.s32 %s53, 7
      %s140 = sand.u32 %s53, 127
      %s141 = sadd.s32 %s138, %s140
      %s142 = sld [smem:[#allocation4 + %s141]]
      %s143 = sld [smem:[#allocation5 + %s141]]
      %s144 = ssub.s32 %s133, %s142
      %s145 = ssub.s32 %s45, %s57
      %s146 = sor.u32 %s144, %s145
      %s147 = ssub.s32 %s134, %s143
      %s148 = sor.u32 %s146, %s147
      %p149 = scmp.eq.s32.totalorder %s148, 0
      %s151 = sadd.s32 %s150, 1
      %s152 = scalar_select %p149, %s150, %s151
      %p155 = pneg %p149
      %p156 = scmp.eq.s32.totalorder %s38, 7
      %p157 = por %p155, %p156
      %p158 = scmp.ne.s32.totalorder %s150, %s153
      %p159 = scmp.eq.s32.totalorder %s38, 0
      %p160 = por %p158, %p159
      %p161 = scmp.ne.s32.totalorder %s150, %s153
      %p162 = scmp.eq.s32.totalorder %s43, 7
      %p163 = por %p161, %p162
      %p164 = scmp.ne.s32.totalorder %s153, %s154
      %p165 = scmp.eq.s32.totalorder %s43, 0
      %p166 = por %p164, %p165
      %p167 = scmp.ne.s32.totalorder %s153, %s154
      %p168 = scmp.eq.s32.totalorder %s44, 7
      %p169 = por %p167, %p168
      %p171 = scmp.ne.s32.totalorder %s154, %s170
      %p172 = scmp.eq.s32.totalorder %s44, 0
      %p173 = por %p171, %p172
      %s174 = sshra.s32 %s46, 7
      %s175 = sand.u32 %s46, 127
      %s176 = sadd.s32 %s174, %s45
      %s177 = smul.u32 %s176, 128
      %s178 = sshra.s32 %s46, 7
      %s179 = sand.u32 %s46, 127
      %s180 = sadd.s32 %s177, %s179
      %s181 = sld [smem:[#allocation4 + %s180]]
      %s182 = sshra.s32 %s53, 7
      %s183 = sand.u32 %s53, 127
      %s184 = sadd.s32 %s182, %s57
      %s185 = smul.u32 %s184, 128
      %s186 = sshra.s32 %s53, 7
      %s187 = sand.u32 %s53, 127
      %s188 = sadd.s32 %s185, %s187
      %s189 = sld [smem:[#allocation4 + %s188]]
      %s190 = ssub.s32 %s181, %s189
      %p191 = scmp.eq.s32.totalorder %s190, 0
      %s193 = sadd.s32 %s192, 1
      %s194 = scalar_select %p191, %s192, %s193
      %p197 = pneg %p191
      %p198 = scmp.eq.s32.totalorder %s38, 7
      %p199 = por %p197, %p198
      %p200 = scmp.ne.s32.totalorder %s192, %s195
      %p201 = scmp.eq.s32.totalorder %s38, 0
      %p202 = por %p200, %p201
      %p203 = scmp.ne.s32.totalorder %s192, %s195
      %p204 = scmp.eq.s32.totalorder %s43, 7
      %p205 = por %p203, %p204
      %p206 = scmp.ne.s32.totalorder %s195, %s196
      %p207 = scmp.eq.s32.totalorder %s43, 0
      %p208 = por %p206, %p207
      %p209 = scmp.ne.s32.totalorder %s195, %s196
      %p210 = scmp.eq.s32.totalorder %s44, 7
      %p211 = por %p209, %p210
      %p213 = scmp.ne.s32.totalorder %s196, %s212
      %p214 = scmp.eq.s32.totalorder %s44, 0
      %p215 = por %p213, %p214
      %s216 = sshra.s32 %s46, 7
      %s217 = sand.u32 %s46, 127
      %s218 = sadd.s32 %s216, %s45
      %s219 = smul.u32 %s218, 128
      %s220 = sshra.s32 %s46, 7
      %s221 = sand.u32 %s46, 127
      %s222 = sadd.s32 %s219, %s221
      %s223 = sld [smem:[#allocation4 + %s222]]
      %s224 = sshra.s32 %s53, 7
      %s225 = sand.u32 %s53, 127
      %s226 = sadd.s32 %s224, %s57
      %s227 = smul.u32 %s226, 128
      %s228 = sshra.s32 %s53, 7
      %s229 = sand.u32 %s53, 127
      %s230 = sadd.s32 %s227, %s229
      %s231 = sld [smem:[#allocation4 + %s230]]
      %s232 = ssub.s32 %s223, %s231
      %s233 = ssub.s32 %s45, %s57
      %s234 = sor.u32 %s232, %s233
      %p235 = scmp.eq.s32.totalorder %s234, 0
      %s237 = sadd.s32 %s236, 1
      %s238 = scalar_select %p235, %s236, %s237
      %p241 = pneg %p235
      %p242 = scmp.eq.s32.totalorder %s38, 7
      %p243 = por %p241, %p242
      %p244 = scmp.ne.s32.totalorder %s236, %s239
      %p245 = scmp.eq.s32.totalorder %s38, 0
      %p246 = por %p244, %p245
      %p247 = scmp.ne.s32.totalorder %s236, %s239
      %p248 = scmp.eq.s32.totalorder %s43, 7
      %p249 = por %p247, %p248
      %p250 = scmp.ne.s32.totalorder %s239, %s240
      %p251 = scmp.eq.s32.totalorder %s43, 0
      %p252 = por %p250, %p251
      %p253 = scmp.ne.s32.totalorder %s239, %s240
      %p254 = scmp.eq.s32.totalorder %s44, 7
      %p255 = por %p253, %p254
      %p257 = scmp.ne.s32.totalorder %s240, %s256
      %p258 = scmp.eq.s32.totalorder %s44, 0
      %p259 = por %p257, %p258
      %s261 = sadd.s32 %s260, 1
      %p264 = scmp.eq.s32.totalorder %s38, 7
      %p265 = scmp.ne.s32.totalorder %s260, %s262
      %p266 = scmp.eq.s32.totalorder %s38, 0
      %p267 = por %p265, %p266
      %p268 = scmp.ne.s32.totalorder %s260, %s262
      %p269 = scmp.eq.s32.totalorder %s43, 7
      %p270 = por %p268, %p269
      %p271 = scmp.ne.s32.totalorder %s262, %s263
      %p272 = scmp.eq.s32.totalorder %s43, 0
      %p273 = por %p271, %p272
      %p274 = scmp.ne.s32.totalorder %s262, %s263
      %p275 = scmp.eq.s32.totalorder %s44, 7
      %p276 = por %p274, %p275
      %p278 = scmp.ne.s32.totalorder %s263, %s277
      %p279 = scmp.eq.s32.totalorder %s44, 0
      %p280 = por %p278, %p279
      %s282 = sadd.s32 %s281, 1
      %p285 = scmp.eq.s32.totalorder %s38, 7
      %p286 = scmp.ne.s32.totalorder %s281, %s283
      %p287 = scmp.eq.s32.totalorder %s38, 0
      %p288 = por %p286, %p287
      %p289 = scmp.ne.s32.totalorder %s281, %s283
      %p290 = scmp.eq.s32.totalorder %s43, 7
      %p291 = por %p289, %p290
      %p292 = scmp.ne.s32.totalorder %s283, %s284
      %p293 = scmp.eq.s32.totalorder %s43, 0
      %p294 = por %p292, %p293
      %p295 = scmp.ne.s32.totalorder %s283, %s284
      %p296 = scmp.eq.s32.totalorder %s44, 7
      %p297 = por %p295, %p296
      %p299 = scmp.ne.s32.totalorder %s284, %s298
      %p300 = scmp.eq.s32.totalorder %s44, 0
      %p301 = por %p299, %p300
      %s302 = ssub.s32 %s45, %s57
      %p303 = scmp.eq.s32.totalorder %s302, 0
      %s305 = sadd.s32 %s304, 1
      %s306 = scalar_select %p303, %s304, %s305
      %p309 = pneg %p303
      %p310 = scmp.eq.s32.totalorder %s38, 7
      %p311 = por %p309, %p310
      %p312 = scmp.ne.s32.totalorder %s304, %s307
      %p313 = scmp.eq.s32.totalorder %s38, 0
      %p314 = por %p312, %p313
      %p315 = scmp.ne.s32.totalorder %s304, %s307
      %p316 = scmp.eq.s32.totalorder %s43, 7
      %p317 = por %p315, %p316
      %p318 = scmp.ne.s32.totalorder %s307, %s308
      %p319 = scmp.eq.s32.totalorder %s43, 0
      %p320 = por %p318, %p319
      %p321 = scmp.ne.s32.totalorder %s307, %s308
      %p322 = scmp.eq.s32.totalorder %s44, 7
      %p323 = por %p321, %p322
      %p325 = scmp.ne.s32.totalorder %s308, %s324
      %p326 = scmp.eq.s32.totalorder %s44, 0
      %p327 = por %p325, %p326
      %p328 = scmp.le.s32.totalorder 1, %s38
      %p329 = scmp.lt.s32.totalorder %s38, 9
      %p330 = pnand %p328, %p329
      %p331 = pneg %p330
      // Predicated region
      $region9: #{tpu_custom_call.1} parent=5 // pred_check
        _
      $region10: #{tpu_custom_call.1} parent=5 // pred_check_branch
        %333 = sbr.rel (%p330) target = $region12
      $region11: #{tpu_custom_call.1} parent=5 // pred_region
        %s334 = ssub.s32 %s38, 1
        // Predicated region
        $region13: #{tpu_custom_call.1} parent=11 // pred_check
          %p335 = pneg %p273
        $region14: #{tpu_custom_call.1} parent=11 // pred_check_branch
          %337 = sbr.rel (%p335) target = $region16
        $region15: #{tpu_custom_call.1} parent=11 // pred_region
          %339 = vsyncadd [#allocation7], 0
          %s340 = sshll.u32 %s8, 4
          %s341 = int_to_ptr.hbm [resolvable:$true] %s340
          %s342 = sshll.u32 [#allocation6], 4
          %s343 = int_to_ptr.vmem [resolvable:$true] %s342
          %348 = dma.hbm_to_vmem [thread:$0]  %s341, 1024, %s343, [#allocation7], 64, 64, 4
        $region16: #{tpu_custom_call.1} parent=11 // pred_fallthru
          _
        // Predicated region
        $region17: #{tpu_custom_call.1} parent=11 // pred_check
          %p349 = pneg %p294
        $region18: #{tpu_custom_call.1} parent=11 // pred_check_branch
          %351 = sbr.rel (%p349) target = $region20
        $region19: #{tpu_custom_call.1} parent=11 // pred_region
          _
        $region20: #{tpu_custom_call.1} parent=11 // pred_fallthru
          _
      $region12: #{tpu_custom_call.1} parent=5 // pred_fallthru
        _
      %p352 = scmp.lt.s32.totalorder %s38, 8
      // Predicated region
      $region21: #{tpu_custom_call.1} parent=5 // pred_check
        %p353 = pneg %p352
      $region22: #{tpu_custom_call.1} parent=5 // pred_check_branch
        %355 = sbr.rel (%p353) target = $region24
      $region23: #{tpu_custom_call.1} parent=5 // pred_region
        // Predicated region
        $region25: #{tpu_custom_call.1} parent=23 // pred_check
          %p356 = pneg %p70
        $region26: #{tpu_custom_call.1} parent=23 // pred_check_branch
          %358 = sbr.rel (%p356) target = $region28
        $region27: #{tpu_custom_call.1} parent=23 // pred_region
          %s359 = smul.u32 8, %s45
          %p360 = scmp.lt.s32.totalorder %s359, 15
          %s361 = scalar_select %p360, %s359, 15
          %s362 = smul.addr %s361, 4
          %s363 = scalar_lea.vmem %s3, %s362
          %s364 = smul.u32 8, %s45
        $region28: #{tpu_custom_call.1} parent=23 // pred_fallthru
          _
        // Predicated region
        $region29: #{tpu_custom_call.1} parent=23 // pred_check
          %p365 = pneg %p112
        $region30: #{tpu_custom_call.1} parent=23 // pred_check_branch
          %367 = sbr.rel (%p365) target = $region32
        $region31: #{tpu_custom_call.1} parent=23 // pred_region
          %s368 = sshra.s32 %s46, 7
          %s369 = sand.u32 %s46, 127
          %s370 = sadd.s32 %s368, %s45
          %s371 = smul.u32 %s370, 128
          %s372 = sshra.s32 %s46, 7
          %s373 = sand.u32 %s46, 127
          %s374 = sadd.s32 %s371, %s373
          %s375 = sld [smem:[#allocation5 + %s374]]
          %s376 = smul.u32 16, %s375
          %p377 = scmp.lt.s32.totalorder %s376, 15
          %s378 = scalar_select %p377, %s376, 15
          %s379 = smul.addr %s378, 4
          %s380 = scalar_lea.vmem %s4, %s379
          %s381 = sshra.s32 %s46, 7
          %s382 = sand.u32 %s46, 127
          %s383 = sadd.s32 %s381, %s45
          %s384 = smul.u32 %s383, 128
          %s385 = sshra.s32 %s46, 7
          %s386 = sand.u32 %s46, 127
          %s387 = sadd.s32 %s384, %s386
          %s388 = sld [smem:[#allocation5 + %s387]]
          %s389 = smul.u32 16, %s388
        $region32: #{tpu_custom_call.1} parent=23 // pred_fallthru
          _
        // Predicated region
        $region33: #{tpu_custom_call.1} parent=23 // pred_check
          %p390 = pneg %p160
        $region34: #{tpu_custom_call.1} parent=23 // pred_check_branch
          %392 = sbr.rel (%p390) target = $region36
        $region35: #{tpu_custom_call.1} parent=23 // pred_region
          %s393 = sshra.s32 %s46, 7
          %s394 = sand.u32 %s46, 127
          %s395 = sadd.s32 %s393, %s45
          %s396 = smul.u32 %s395, 128
          %s397 = sshra.s32 %s46, 7
          %s398 = sand.u32 %s46, 127
          %s399 = sadd.s32 %s396, %s398
          %s400 = sld [smem:[#allocation4 + %s399]]
          %s401 = sld [smem:[#allocation5 + %s399]]
          %s402 = smul.u32 2, %s45
          %p403 = scmp.lt.s32.totalorder %s400, 3
          %s404 = scalar_select %p403, %s400, 3
          %p405 = scmp.lt.s32.totalorder %s402, 3
          %s406 = scalar_select %p405, %s402, 3
          %p407 = scmp.lt.s32.totalorder %s401, 0
          %s408 = scalar_select %p407, %s401, 0
          %s409 = sadd.s32 %s408, %s406
          %s410 = smul.addr %s404, 4
          %s411 = sadd.s32 %s409, %s410
          %s412 = smul.addr %s411, 8
          %s413 = scalar_lea.vmem %s5, %s412
          %s414 = sshra.s32 %s46, 7
          %s415 = sand.u32 %s46, 127
          %s416 = sadd.s32 %s414, %s45
          %s417 = smul.u32 %s416, 128
          %s418 = sshra.s32 %s46, 7
          %s419 = sand.u32 %s46, 127
          %s420 = sadd.s32 %s417, %s419
          %s421 = sld [smem:[#allocation4 + %s420]]
          %s422 = sld [smem:[#allocation5 + %s420]]
          %s423 = smul.u32 2, %s45
        $region36: #{tpu_custom_call.1} parent=23 // pred_fallthru
          _
        // Predicated region
        $region37: #{tpu_custom_call.1} parent=23 // pred_check
          %p424 = pneg %p202
        $region38: #{tpu_custom_call.1} parent=23 // pred_check_branch
          %426 = sbr.rel (%p424) target = $region40
        $region39: #{tpu_custom_call.1} parent=23 // pred_region
          %s427 = sshra.s32 %s46, 7
          %s428 = sand.u32 %s46, 127
          %s429 = sadd.s32 %s427, %s45
          %s430 = smul.u32 %s429, 128
          %s431 = sshra.s32 %s46, 7
          %s432 = sand.u32 %s46, 127
          %s433 = sadd.s32 %s430, %s432
          %s434 = sld [smem:[#allocation4 + %s433]]
          %p435 = scmp.lt.s32.totalorder %s434, 3
          %s436 = scalar_select %p435, %s434, 3
          %s437 = smul.addr %s436, 16
          %s438 = smul.addr %s437, 4
          %s439 = scalar_lea.vmem %s6, %s438
          %s440 = sshra.s32 %s46, 7
          %s441 = sand.u32 %s46, 127
          %s442 = sadd.s32 %s440, %s45
          %s443 = smul.u32 %s442, 128
          %s444 = sshra.s32 %s46, 7
          %s445 = sand.u32 %s46, 127
          %s446 = sadd.s32 %s443, %s445
          %s447 = sld [smem:[#allocation4 + %s446]]
        $region40: #{tpu_custom_call.1} parent=23 // pred_fallthru
          _
        // Predicated region
        $region41: #{tpu_custom_call.1} parent=23 // pred_check
          %p448 = pneg %p246
        $region42: #{tpu_custom_call.1} parent=23 // pred_check_branch
          %450 = sbr.rel (%p448) target = $region44
        $region43: #{tpu_custom_call.1} parent=23 // pred_region
          %s451 = sshra.s32 %s46, 7
          %s452 = sand.u32 %s46, 127
          %s453 = sadd.s32 %s451, %s45
          %s454 = smul.u32 %s453, 128
          %s455 = sshra.s32 %s46, 7
          %s456 = sand.u32 %s46, 127
          %s457 = sadd.s32 %s454, %s456
          %s458 = sld [smem:[#allocation4 + %s457]]
          %s459 = smul.u32 8, %s45
          %p460 = scmp.lt.s32.totalorder %s458, 3
          %s461 = scalar_select %p460, %s458, 3
          %p462 = scmp.lt.s32.totalorder %s459, 15
          %s463 = scalar_select %p462, %s459, 15
          %s464 = smul.addr %s461, 16
          %s465 = sadd.s32 %s463, %s464
          %s466 = smul.addr %s465, 8
          %s467 = scalar_lea.vmem %s7, %s466
          %s468 = sshra.s32 %s46, 7
          %s469 = sand.u32 %s46, 127
          %s470 = sadd.s32 %s468, %s45
          %s471 = smul.u32 %s470, 128
          %s472 = sshra.s32 %s46, 7
          %s473 = sand.u32 %s46, 127
          %s474 = sadd.s32 %s471, %s473
          %s475 = sld [smem:[#allocation4 + %s474]]
          %s476 = smul.u32 8, %s45
        $region44: #{tpu_custom_call.1} parent=23 // pred_fallthru
          _
      $region24: #{tpu_custom_call.1} parent=5 // pred_fallthru
        _
      %p477 = scmp.le.s32.totalorder 1, %s38
      %p478 = scmp.lt.s32.totalorder %s38, 9
      %p479 = pnand %p477, %p478
      %p480 = pneg %p479
      // Predicated region
      $region45: #{tpu_custom_call.1} parent=5 // pred_check
        _
      $region46: #{tpu_custom_call.1} parent=5 // pred_check_branch
        %482 = sbr.rel (%p479) target = $region48
      $region47: #{tpu_custom_call.1} parent=5 // pred_region
        %s483 = ssub.s32 %s38, 1
        // Predicated region
        $region49: #{tpu_custom_call.1} parent=47 // pred_check
          %p484 = pneg %p273
        $region50: #{tpu_custom_call.1} parent=47 // pred_check_branch
          %486 = sbr.rel (%p484) target = $region52
        $region51: #{tpu_custom_call.1} parent=47 // pred_region
          %488 = dma.done [#allocation7], 1024
        $region52: #{tpu_custom_call.1} parent=47 // pred_fallthru
          _
        %s489 = smul.u32 8, %s47
        %p490 = scmp.lt.s32.totalorder %s489, 15
        %s491 = scalar_select %p490, %s489, 15
        %s492 = smul.addr %s491, 4
        %s493 = scalar_lea.vmem %s3, %s492
        %p494 = pneg %p76
        %p495 = pneg %p73
        %s496 = sshra.s32 %s48, 7
        %s497 = sand.u32 %s48, 127
        %s498 = sadd.s32 %s496, %s47
        %s499 = smul.u32 %s498, 128
        %s500 = sshra.s32 %s48, 7
        %s501 = sand.u32 %s48, 127
        %s502 = sadd.s32 %s499, %s501
        %s503 = sld [smem:[#allocation5 + %s502]]
        %s504 = smul.u32 16, %s503
        %p505 = scmp.lt.s32.totalorder %s504, 15
        %s506 = scalar_select %p505, %s504, 15
        %s507 = smul.addr %s506, 4
        %s508 = scalar_lea.vmem %s4, %s507
        %p509 = pneg %p118
        %p510 = pneg %p115
        %s511 = sshra.s32 %s48, 7
        %s512 = sand.u32 %s48, 127
        %s513 = sadd.s32 %s511, %s47
        %s514 = smul.u32 %s513, 128
        %s515 = sshra.s32 %s48, 7
        %s516 = sand.u32 %s48, 127
        %s517 = sadd.s32 %s514, %s516
        %s518 = sld [smem:[#allocation4 + %s517]]
        %s519 = sld [smem:[#allocation5 + %s517]]
        %s520 = smul.u32 2, %s47
        %p521 = scmp.lt.s32.totalorder %s518, 3
        %s522 = scalar_select %p521, %s518, 3
        %p523 = scmp.lt.s32.totalorder %s520, 3
        %s524 = scalar_select %p523, %s520, 3
        %p525 = scmp.lt.s32.totalorder %s519, 0
        %s526 = scalar_select %p525, %s519, 0
        %s527 = sadd.s32 %s526, %s524
        %s528 = smul.addr %s522, 4
        %s529 = sadd.s32 %s527, %s528
        %s530 = smul.addr %s529, 8
        %s531 = scalar_lea.vmem %s5, %s530
        %p532 = pneg %p166
        %p533 = pneg %p163
        %s534 = sshra.s32 %s48, 7
        %s535 = sand.u32 %s48, 127
        %s536 = sadd.s32 %s534, %s47
        %s537 = smul.u32 %s536, 128
        %s538 = sshra.s32 %s48, 7
        %s539 = sand.u32 %s48, 127
        %s540 = sadd.s32 %s537, %s539
        %s541 = sld [smem:[#allocation4 + %s540]]
        %p542 = scmp.lt.s32.totalorder %s541, 3
        %s543 = scalar_select %p542, %s541, 3
        %s544 = smul.addr %s543, 16
        %s545 = smul.addr %s544, 4
        %s546 = scalar_lea.vmem %s6, %s545
        %p547 = pneg %p208
        %p548 = pneg %p205
        %s549 = sshra.s32 %s48, 7
        %s550 = sand.u32 %s48, 127
        %s551 = sadd.s32 %s549, %s47
        %s552 = smul.u32 %s551, 128
        %s553 = sshra.s32 %s48, 7
        %s554 = sand.u32 %s48, 127
        %s555 = sadd.s32 %s552, %s554
        %s556 = sld [smem:[#allocation4 + %s555]]
        %s557 = smul.u32 8, %s47
        %p558 = scmp.lt.s32.totalorder %s556, 3
        %s559 = scalar_select %p558, %s556, 3
        %p560 = scmp.lt.s32.totalorder %s557, 15
        %s561 = scalar_select %p560, %s557, 15
        %s562 = smul.addr %s559, 16
        %s563 = sadd.s32 %s561, %s562
        %s564 = smul.addr %s563, 8
        %s565 = scalar_lea.vmem %s7, %s564
        %p566 = pneg %p252
        %p567 = pneg %p249
        %p568 = pneg %p273
        %p569 = pneg %p270
        %p570 = pneg %p294
        %p571 = pneg %p291
        %p572 = pneg %p320
        %p573 = pneg %p317
        %s574 = sand.u32 %s307, 1
        %s575 = scalar_lea.sflag [#allocation8], %s574
        %s576 = sand.u32 %s307, 1
        %s577 = smul.addr %s576, 64
        %s578 = scalar_lea.vmem [#allocation9], %s577
        %s579 = smul.u32 8, %s47
        %p580 = scmp.lt.s32.totalorder %s579, 15
        %s581 = scalar_select %p580, %s579, 15
        %s582 = smul.addr %s581, 4
        %s583 = scalar_lea.vmem %s3, %s582
        %s584 = smul.u32 8, %s47
        %s585 = sshra.s32 %s48, 7
        %s586 = sand.u32 %s48, 127
        %s587 = sadd.s32 %s585, %s47
        %s588 = smul.u32 %s587, 128
        %s589 = sshra.s32 %s48, 7
        %s590 = sand.u32 %s48, 127
        %s591 = sadd.s32 %s588, %s590
        %s592 = sld [smem:[#allocation5 + %s591]]
        %s593 = smul.u32 16, %s592
        %p594 = scmp.lt.s32.totalorder %s593, 15
        %s595 = scalar_select %p594, %s593, 15
        %s596 = smul.addr %s595, 4
        %s597 = scalar_lea.vmem %s4, %s596
        %s598 = sshra.s32 %s48, 7
        %s599 = sand.u32 %s48, 127
        %s600 = sadd.s32 %s598, %s47
        %s601 = smul.u32 %s600, 128
        %s602 = sshra.s32 %s48, 7
        %s603 = sand.u32 %s48, 127
        %s604 = sadd.s32 %s601, %s603
        %s605 = sld [smem:[#allocation5 + %s604]]
        %s606 = smul.u32 16, %s605
        %s607 = sshra.s32 %s48, 7
        %s608 = sand.u32 %s48, 127
        %s609 = sadd.s32 %s607, %s47
        %s610 = smul.u32 %s609, 128
        %s611 = sshra.s32 %s48, 7
        %s612 = sand.u32 %s48, 127
        %s613 = sadd.s32 %s610, %s612
        %s614 = sld [smem:[#allocation4 + %s613]]
        %s615 = sld [smem:[#allocation5 + %s613]]
        %s616 = smul.u32 2, %s47
        %p617 = scmp.lt.s32.totalorder %s614, 3
        %s618 = scalar_select %p617, %s614, 3
        %p619 = scmp.lt.s32.totalorder %s616, 3
        %s620 = scalar_select %p619, %s616, 3
        %p621 = scmp.lt.s32.totalorder %s615, 0
        %s622 = scalar_select %p621, %s615, 0
        %s623 = sadd.s32 %s622, %s620
        %s624 = smul.addr %s618, 4
        %s625 = sadd.s32 %s623, %s624
        %s626 = smul.addr %s625, 8
        %s627 = scalar_lea.vmem %s5, %s626
        %s628 = sshra.s32 %s48, 7
        %s629 = sand.u32 %s48, 127
        %s630 = sadd.s32 %s628, %s47
        %s631 = smul.u32 %s630, 128
        %s632 = sshra.s32 %s48, 7
        %s633 = sand.u32 %s48, 127
        %s634 = sadd.s32 %s631, %s633
        %s635 = sld [smem:[#allocation4 + %s634]]
        %s636 = sld [smem:[#allocation5 + %s634]]
        %s637 = smul.u32 2, %s47
        %s638 = sshra.s32 %s48, 7
        %s639 = sand.u32 %s48, 127
        %s640 = sadd.s32 %s638, %s47
        %s641 = smul.u32 %s640, 128
        %s642 = sshra.s32 %s48, 7
        %s643 = sand.u32 %s48, 127
        %s644 = sadd.s32 %s641, %s643
        %s645 = sld [smem:[#allocation4 + %s644]]
        %p646 = scmp.lt.s32.totalorder %s645, 3
        %s647 = scalar_select %p646, %s645, 3
        %s648 = smul.addr %s647, 16
        %s649 = smul.addr %s648, 4
        %s650 = scalar_lea.vmem %s6, %s649
        %s651 = sshra.s32 %s48, 7
        %s652 = sand.u32 %s48, 127
        %s653 = sadd.s32 %s651, %s47
        %s654 = smul.u32 %s653, 128
        %s655 = sshra.s32 %s48, 7
        %s656 = sand.u32 %s48, 127
        %s657 = sadd.s32 %s654, %s656
        %s658 = sld [smem:[#allocation4 + %s657]]
        %s659 = sshra.s32 %s48, 7
        %s660 = sand.u32 %s48, 127
        %s661 = sadd.s32 %s659, %s47
        %s662 = smul.u32 %s661, 128
        %s663 = sshra.s32 %s48, 7
        %s664 = sand.u32 %s48, 127
        %s665 = sadd.s32 %s662, %s664
        %s666 = sld [smem:[#allocation4 + %s665]]
        %s667 = smul.u32 8, %s47
        %p668 = scmp.lt.s32.totalorder %s666, 3
        %s669 = scalar_select %p668, %s666, 3
        %p670 = scmp.lt.s32.totalorder %s667, 15
        %s671 = scalar_select %p670, %s667, 15
        %s672 = smul.addr %s669, 16
        %s673 = sadd.s32 %s671, %s672
        %s674 = smul.addr %s673, 8
        %s675 = scalar_lea.vmem %s7, %s674
        %s676 = sshra.s32 %s48, 7
        %s677 = sand.u32 %s48, 127
        %s678 = sadd.s32 %s676, %s47
        %s679 = smul.u32 %s678, 128
        %s680 = sshra.s32 %s48, 7
        %s681 = sand.u32 %s48, 127
        %s682 = sadd.s32 %s679, %s681
        %s683 = sld [smem:[#allocation4 + %s682]]
        %s684 = smul.u32 8, %s47
        %s685 = smul.u32 8, %s47
        %p686 = scmp.eq.s32.totalorder %s48, 0
        // Predicated region
        $region53: #{tpu_custom_call.1} parent=47 // pred_check
          %p687 = pneg %p686
        $region54: #{tpu_custom_call.1} parent=47 // pred_check_branch
          %689 = sbr.rel (%p687) target = $region56
        $region55: #{tpu_custom_call.1} parent=47 // pred_region
          %v690 = vld [vmem:[%s583] sm:$0xf]
          %v691 = vld [vmem:[%s583 + $0x4] sm:$0xf]
          %v692 = vld [vmem:[%s583 + $0x8] sm:$0xf]
          %v693 = vld [vmem:[%s583 + $0xc] sm:$0xf]
          %v694 = vld [vmem:[%s583 + $0x10] sm:$0xf]
          %v695 = vld [vmem:[%s583 + $0x14] sm:$0xf]
          %v696 = vld [vmem:[%s583 + $0x18] sm:$0xf]
          %v697 = vld [vmem:[%s583 + $0x1c] sm:$0xf]
          %v698 = vld [vmem:[#allocation6] sm:$0xf]
          %v699 = vld [vmem:[#allocation6 + $0x4] sm:$0xf]
          %v700 = vld [vmem:[#allocation6 + $0x8] sm:$0xf]
          %v701 = vld [vmem:[#allocation6 + $0xc] sm:$0xf]
          %v702 = vld [vmem:[#allocation6 + $0x10] sm:$0xf]
          %v703 = vld [vmem:[#allocation6 + $0x14] sm:$0xf]
          %v704 = vld [vmem:[#allocation6 + $0x18] sm:$0xf]
          %v705 = vld [vmem:[#allocation6 + $0x1c] sm:$0xf]
          %v706 = vld [vmem:[#allocation6 + $0x20] sm:$0xf]
          %v707 = vld [vmem:[#allocation6 + $0x24] sm:$0xf]
          %v708 = vld [vmem:[#allocation6 + $0x28] sm:$0xf]
          %v709 = vld [vmem:[#allocation6 + $0x2c] sm:$0xf]
          %v710 = vld [vmem:[#allocation6 + $0x30] sm:$0xf]
          %v711 = vld [vmem:[#allocation6 + $0x34] sm:$0xf]
          %v712 = vld [vmem:[#allocation6 + $0x38] sm:$0xf]
          %v713 = vld [vmem:[#allocation6 + $0x3c] sm:$0xf]
          %v714 = vld [vmem:[%s9] sm:$0x1]
          %v716 = vperm.slane %v714, 0
          %v726 = vunpack.c.l.b16 %v690
          %v727 = vunpack.c.l.b16 %v691
          %v728 = vunpack.c.l.b16 %v692
          %v729 = vunpack.c.l.b16 %v693
          %v730 = vunpack.c.l.b16 %v694
          %v731 = vunpack.c.l.b16 %v695
          %v732 = vunpack.c.l.b16 %v696
          %v733 = vunpack.c.l.b16 %v697
          %v734 = vpack.c.b16 %v727, %v726
          %v735 = vpack.c.b16 %v729, %v728
          %v736 = vpack.c.b16 %v731, %v730
          %v737 = vpack.c.b16 %v733, %v732
          %v758 = vunpack.c.l.b16 %v698
          %v759 = vunpack.c.l.b16 %v699
          %v760 = vunpack.c.l.b16 %v700
          %v761 = vunpack.c.l.b16 %v701
          %v762 = vunpack.c.l.b16 %v702
          %v763 = vunpack.c.l.b16 %v703
          %v764 = vunpack.c.l.b16 %v704
          %v765 = vunpack.c.l.b16 %v705
          %v766 = vunpack.c.l.b16 %v706
          %v767 = vunpack.c.l.b16 %v707
          %v768 = vunpack.c.l.b16 %v708
          %v769 = vunpack.c.l.b16 %v709
          %v770 = vunpack.c.l.b16 %v710
          %v771 = vunpack.c.l.b16 %v711
          %v772 = vunpack.c.l.b16 %v712
          %v773 = vunpack.c.l.b16 %v713
          %v774 = vpack.c.b16 %v759, %v758
          %v775 = vpack.c.b16 %v761, %v760
          %v776 = vpack.c.b16 %v763, %v762
          %v777 = vpack.c.b16 %v765, %v764
          %v778 = vpack.c.b16 %v767, %v766
          %v779 = vpack.c.b16 %v769, %v768
          %v780 = vpack.c.b16 %v771, %v770
          %v781 = vpack.c.b16 %v773, %v772
          %790 = vmatpush.bf16.msra.mxu0 %v781
          %791 = vmatpush.bf16.msra.mxu0 %v780
          %792 = vmatpush.bf16.msra.mxu0 %v779
          %793 = vmatpush.bf16.msra.mxu0 %v778
          %794 = vmatpush.bf16.msra.mxu0 %v777
          %795 = vmatpush.bf16.msra.mxu0 %v776
          %796 = vmatpush.bf16.msra.mxu0 %v775
          %797 = vmatpush.bf16.msra.mxu0 %v774
          %798 = vmatmul.bf16.gmra.mxu0 %v734
          %v799 = vpop.f32.mrf.mxu0
          %v800 = vadd.f32 %v716, %v799
          %v801 = vpop.f32.mrf.mxu0
          %v802 = vadd.f32 %v716, %v801
          %803 = vmatmul.bf16.gmra.mxu0 %v735
          %v804 = vpop.f32.mrf.mxu0
          %v805 = vadd.f32 %v716, %v804
          %v806 = vpop.f32.mrf.mxu0
          %v807 = vadd.f32 %v716, %v806
          %808 = vmatmul.bf16.gmra.mxu0 %v736
          %v809 = vpop.f32.mrf.mxu0
          %v810 = vadd.f32 %v716, %v809
          %v811 = vpop.f32.mrf.mxu0
          %v812 = vadd.f32 %v716, %v811
          %813 = vmatmul.bf16.gmra.mxu0 %v737
          %v814 = vpop.f32.mrf.mxu0
          %v815 = vadd.f32 %v716, %v814
          %v816 = vpop.f32.mrf.mxu0
          %v817 = vadd.f32 %v716, %v816
          %818 = vdwg.mxu0
          %819 = vst [vmem:[%s578] sm:$0xff] %v800
          %820 = vst [vmem:[%s578 + $0x8] sm:$0xff] %v802
          %821 = vst [vmem:[%s578 + $0x10] sm:$0xff] %v805
          %822 = vst [vmem:[%s578 + $0x18] sm:$0xff] %v807
          %823 = vst [vmem:[%s578 + $0x20] sm:$0xff] %v810
          %824 = vst [vmem:[%s578 + $0x28] sm:$0xff] %v812
          %825 = vst [vmem:[%s578 + $0x30] sm:$0xff] %v815
          %826 = vst [vmem:[%s578 + $0x38] sm:$0xff] %v817
        $region56: #{tpu_custom_call.1} parent=47 // pred_fallthru
          _
        %s827 = sld [smem:[#allocation3 + %s47]]
        %p828 = scmp.lt.s32.totalorder %s48, %s827
        // Predicated region
        $region57: #{tpu_custom_call.1} parent=47 // pred_check
          %p829 = pneg %p828
        $region58: #{tpu_custom_call.1} parent=47 // pred_check_branch
          %831 = sbr.rel (%p829) target = $region60
        $region59: #{tpu_custom_call.1} parent=47 // pred_region
          %v832 = vld [vmem:[%s627] sm:$0xff]
          %v833 = vld [vmem:[%s627 + $0x8] sm:$0xff]
          %v834 = vunpack.c.0.s8 %v832
          %v835 = vunpack.c.1.s8 %v832
          %v836 = vunpack.c.2.s8 %v832
          %v837 = vunpack.c.3.s8 %v832
          %v838 = vunpack.c.0.s8 %v833
          %v839 = vunpack.c.1.s8 %v833
          %v840 = vunpack.c.2.s8 %v833
          %v841 = vunpack.c.3.s8 %v833
          %v842 = vcvt.s32.f32 %v834
          %v843 = vcvt.s32.f32 %v835
          %v844 = vcvt.s32.f32 %v836
          %v845 = vcvt.s32.f32 %v837
          %v846 = vcvt.s32.f32 %v838
          %v847 = vcvt.s32.f32 %v839
          %v848 = vcvt.s32.f32 %v840
          %v849 = vcvt.s32.f32 %v841
          %v850 = vpack.c.bf16 %v843, %v842
          %v851 = vpack.c.bf16 %v845, %v844
          %v852 = vpack.c.bf16 %v847, %v846
          %v853 = vpack.c.bf16 %v849, %v848
          %v854 = vld [vmem:[%s597] sm:$0xf]
          %v855 = vld [vmem:[%s597 + $0x4] sm:$0xf]
          %v856 = vld [vmem:[%s597 + $0x8] sm:$0xf]
          %v857 = vld [vmem:[%s597 + $0xc] sm:$0xf]
          %v858 = vld [vmem:[%s597 + $0x10] sm:$0xf]
          %v859 = vld [vmem:[%s597 + $0x14] sm:$0xf]
          %v860 = vld [vmem:[%s597 + $0x18] sm:$0xf]
          %v861 = vld [vmem:[%s597 + $0x1c] sm:$0xf]
          %v862 = vld [vmem:[%s597 + $0x20] sm:$0xf]
          %v863 = vld [vmem:[%s597 + $0x24] sm:$0xf]
          %v864 = vld [vmem:[%s597 + $0x28] sm:$0xf]
          %v865 = vld [vmem:[%s597 + $0x2c] sm:$0xf]
          %v866 = vld [vmem:[%s597 + $0x30] sm:$0xf]
          %v867 = vld [vmem:[%s597 + $0x34] sm:$0xf]
          %v868 = vld [vmem:[%s597 + $0x38] sm:$0xf]
          %v869 = vld [vmem:[%s597 + $0x3c] sm:$0xf]
          %v886 = vunpack.c.l.b16 %v854
          %v887 = vunpack.c.l.b16 %v855
          %v888 = vunpack.c.l.b16 %v856
          %v889 = vunpack.c.l.b16 %v857
          %v890 = vunpack.c.l.b16 %v858
          %v891 = vunpack.c.l.b16 %v859
          %v892 = vunpack.c.l.b16 %v860
          %v893 = vunpack.c.l.b16 %v861
          %v894 = vunpack.c.l.b16 %v862
          %v895 = vunpack.c.l.b16 %v863
          %v896 = vunpack.c.l.b16 %v864
          %v897 = vunpack.c.l.b16 %v865
          %v898 = vunpack.c.l.b16 %v866
          %v899 = vunpack.c.l.b16 %v867
          %v900 = vunpack.c.l.b16 %v868
          %v901 = vunpack.c.l.b16 %v869
          %v902 = vpack.c.b16 %v887, %v886
          %v903 = vpack.c.b16 %v889, %v888
          %v904 = vpack.c.b16 %v891, %v890
          %v905 = vpack.c.b16 %v893, %v892
          %v906 = vpack.c.b16 %v895, %v894
          %v907 = vpack.c.b16 %v897, %v896
          %v908 = vpack.c.b16 %v899, %v898
          %v909 = vpack.c.b16 %v901, %v900
          %918 = vmatpush.bf16.msra.mxu0 %v909
          %919 = vmatpush.bf16.msra.mxu0 %v908
          %920 = vmatpush.bf16.msra.mxu0 %v907
          %921 = vmatpush.bf16.msra.mxu0 %v906
          %922 = vmatpush.bf16.msra.mxu0 %v905
          %923 = vmatpush.bf16.msra.mxu0 %v904
          %924 = vmatpush.bf16.msra.mxu0 %v903
          %925 = vmatpush.bf16.msra.mxu0 %v902
          %926 = vmatmul.bf16.gmra.mxu0 %v850
          %v927 = vpop.f32.mrf.mxu0
          %v928 = vadd.f32 0.0, %v927
          %v929 = vpop.f32.mrf.mxu0
          %v930 = vadd.f32 0.0, %v929
          %931 = vmatmul.bf16.gmra.mxu0 %v851
          %v932 = vpop.f32.mrf.mxu0
          %v933 = vadd.f32 0.0, %v932
          %v934 = vpop.f32.mrf.mxu0
          %v935 = vadd.f32 0.0, %v934
          %936 = vmatmul.bf16.gmra.mxu0 %v852
          %v937 = vpop.f32.mrf.mxu0
          %v938 = vadd.f32 0.0, %v937
          %v939 = vpop.f32.mrf.mxu0
          %v940 = vadd.f32 0.0, %v939
          %941 = vmatmul.bf16.gmra.mxu0 %v853
          %v942 = vpop.f32.mrf.mxu0
          %v943 = vadd.f32 0.0, %v942
          %v944 = vpop.f32.mrf.mxu0
          %v945 = vadd.f32 0.0, %v944
          %946 = vdwg.mxu0
          %v947 = vld [vmem:[%s675] sm:$0xff]
          %v948 = vld [vmem:[%s675 + $0x8] sm:$0xff]
          %v949 = vld [vmem:[%s675 + $0x10] sm:$0xff]
          %v950 = vld [vmem:[%s675 + $0x18] sm:$0xff]
          %v951 = vld [vmem:[%s675 + $0x20] sm:$0xff]
          %v952 = vld [vmem:[%s675 + $0x28] sm:$0xff]
          %v953 = vld [vmem:[%s675 + $0x30] sm:$0xff]
          %v954 = vld [vmem:[%s675 + $0x38] sm:$0xff]
          %956 = vset.pattern.permute.xlu0 0
          %957 = vperm.xlu0 %956, %v947
          %v958 = vpop.permute.xlu0 %957
          %961 = vset.pattern.permute.xlu0 0
          %962 = vperm.xlu0 %961, %v948
          %v963 = vpop.permute.xlu0 %962
          %966 = vset.pattern.permute.xlu0 0
          %967 = vperm.xlu0 %966, %v949
          %v968 = vpop.permute.xlu0 %967
          %971 = vset.pattern.permute.xlu0 0
          %972 = vperm.xlu0 %971, %v950
          %v973 = vpop.permute.xlu0 %972
          %976 = vset.pattern.permute.xlu0 0
          %977 = vperm.xlu0 %976, %v951
          %v978 = vpop.permute.xlu0 %977
          %981 = vset.pattern.permute.xlu0 0
          %982 = vperm.xlu0 %981, %v952
          %v983 = vpop.permute.xlu0 %982
          %986 = vset.pattern.permute.xlu0 0
          %987 = vperm.xlu0 %986, %v953
          %v988 = vpop.permute.xlu0 %987
          %991 = vset.pattern.permute.xlu0 0
          %992 = vperm.xlu0 %991, %v954
          %v993 = vpop.permute.xlu0 %992
          %v995 = vmul.f32 %v928, %v958
          %v996 = vmul.f32 %v930, %v963
          %v997 = vmul.f32 %v933, %v968
          %v998 = vmul.f32 %v935, %v973
          %v999 = vmul.f32 %v938, %v978
          %v1000 = vmul.f32 %v940, %v983
          %v1001 = vmul.f32 %v943, %v988
          %v1002 = vmul.f32 %v945, %v993
          %v1003 = vld [vmem:[%s578] sm:$0xff]
          %v1004 = vld [vmem:[%s578 + $0x8] sm:$0xff]
          %v1005 = vld [vmem:[%s578 + $0x10] sm:$0xff]
          %v1006 = vld [vmem:[%s578 + $0x18] sm:$0xff]
          %v1007 = vld [vmem:[%s578 + $0x20] sm:$0xff]
          %v1008 = vld [vmem:[%s578 + $0x28] sm:$0xff]
          %v1009 = vld [vmem:[%s578 + $0x30] sm:$0xff]
          %v1010 = vld [vmem:[%s578 + $0x38] sm:$0xff]
          %v1011 = vpack.c.bf16 %v996, %v995
          %v1012 = vpack.c.bf16 %v998, %v997
          %v1013 = vpack.c.bf16 %v1000, %v999
          %v1014 = vpack.c.bf16 %v1002, %v1001
          %v1015 = vld [vmem:[%s650] sm:$0xf]
          %v1016 = vld [vmem:[%s650 + $0x4] sm:$0xf]
          %v1017 = vld [vmem:[%s650 + $0x8] sm:$0xf]
          %v1018 = vld [vmem:[%s650 + $0xc] sm:$0xf]
          %v1019 = vld [vmem:[%s650 + $0x10] sm:$0xf]
          %v1020 = vld [vmem:[%s650 + $0x14] sm:$0xf]
          %v1021 = vld [vmem:[%s650 + $0x18] sm:$0xf]
          %v1022 = vld [vmem:[%s650 + $0x1c] sm:$0xf]
          %v1023 = vld [vmem:[%s650 + $0x20] sm:$0xf]
          %v1024 = vld [vmem:[%s650 + $0x24] sm:$0xf]
          %v1025 = vld [vmem:[%s650 + $0x28] sm:$0xf]
          %v1026 = vld [vmem:[%s650 + $0x2c] sm:$0xf]
          %v1027 = vld [vmem:[%s650 + $0x30] sm:$0xf]
          %v1028 = vld [vmem:[%s650 + $0x34] sm:$0xf]
          %v1029 = vld [vmem:[%s650 + $0x38] sm:$0xf]
          %v1030 = vld [vmem:[%s650 + $0x3c] sm:$0xf]
          %v1047 = vunpack.c.l.b16 %v1015
          %v1048 = vunpack.c.l.b16 %v1016
          %v1049 = vunpack.c.l.b16 %v1017
          %v1050 = vunpack.c.l.b16 %v1018
          %v1051 = vunpack.c.l.b16 %v1019
          %v1052 = vunpack.c.l.b16 %v1020
          %v1053 = vunpack.c.l.b16 %v1021
          %v1054 = vunpack.c.l.b16 %v1022
          %v1055 = vunpack.c.l.b16 %v1023
          %v1056 = vunpack.c.l.b16 %v1024
          %v1057 = vunpack.c.l.b16 %v1025
          %v1058 = vunpack.c.l.b16 %v1026
          %v1059 = vunpack.c.l.b16 %v1027
          %v1060 = vunpack.c.l.b16 %v1028
          %v1061 = vunpack.c.l.b16 %v1029
          %v1062 = vunpack.c.l.b16 %v1030
          %v1063 = vpack.c.b16 %v1048, %v1047
          %v1064 = vpack.c.b16 %v1050, %v1049
          %v1065 = vpack.c.b16 %v1052, %v1051
          %v1066 = vpack.c.b16 %v1054, %v1053
          %v1067 = vpack.c.b16 %v1056, %v1055
          %v1068 = vpack.c.b16 %v1058, %v1057
          %v1069 = vpack.c.b16 %v1060, %v1059
          %v1070 = vpack.c.b16 %v1062, %v1061
          %1079 = vmatpush.bf16.msra.mxu0 %v1070
          %1080 = vmatpush.bf16.msra.mxu0 %v1069
          %1081 = vmatpush.bf16.msra.mxu0 %v1068
          %1082 = vmatpush.bf16.msra.mxu0 %v1067
          %1083 = vmatpush.bf16.msra.mxu0 %v1066
          %1084 = vmatpush.bf16.msra.mxu0 %v1065
          %1085 = vmatpush.bf16.msra.mxu0 %v1064
          %1086 = vmatpush.bf16.msra.mxu0 %v1063
          %1087 = vmatmul.bf16.gmra.mxu0 %v1011
          %v1088 = vpop.f32.mrf.mxu0
          %v1089 = vadd.f32 0.0, %v1088
          %v1090 = vpop.f32.mrf.mxu0
          %v1091 = vadd.f32 0.0, %v1090
          %1092 = vmatmul.bf16.gmra.mxu0 %v1012
          %v1093 = vpop.f32.mrf.mxu0
          %v1094 = vadd.f32 0.0, %v1093
          %v1095 = vpop.f32.mrf.mxu0
          %v1096 = vadd.f32 0.0, %v1095
          %1097 = vmatmul.bf16.gmra.mxu0 %v1013
          %v1098 = vpop.f32.mrf.mxu0
          %v1099 = vadd.f32 0.0, %v1098
          %v1100 = vpop.f32.mrf.mxu0
          %v1101 = vadd.f32 0.0, %v1100
          %1102 = vmatmul.bf16.gmra.mxu0 %v1014
          %v1103 = vpop.f32.mrf.mxu0
          %v1104 = vadd.f32 0.0, %v1103
          %v1105 = vpop.f32.mrf.mxu0
          %v1106 = vadd.f32 0.0, %v1105
          %1107 = vdwg.mxu0
          %v1108 = vadd.f32 %v1003, %v1089
          %v1109 = vadd.f32 %v1004, %v1091
          %v1110 = vadd.f32 %v1005, %v1094
          %v1111 = vadd.f32 %v1006, %v1096
          %v1112 = vadd.f32 %v1007, %v1099
          %v1113 = vadd.f32 %v1008, %v1101
          %v1114 = vadd.f32 %v1009, %v1104
          %v1115 = vadd.f32 %v1010, %v1106
          %1116 = vst [vmem:[%s578] sm:$0xff] %v1108
          %1117 = vst [vmem:[%s578 + $0x8] sm:$0xff] %v1109
          %1118 = vst [vmem:[%s578 + $0x10] sm:$0xff] %v1110
          %1119 = vst [vmem:[%s578 + $0x18] sm:$0xff] %v1111
          %1120 = vst [vmem:[%s578 + $0x20] sm:$0xff] %v1112
          %1121 = vst [vmem:[%s578 + $0x28] sm:$0xff] %v1113
          %1122 = vst [vmem:[%s578 + $0x30] sm:$0xff] %v1114
          %1123 = vst [vmem:[%s578 + $0x38] sm:$0xff] %v1115
        $region60: #{tpu_custom_call.1} parent=47 // pred_fallthru
          _
        %s1124 = sand.u32 %s307, 1
        %s1125 = scalar_lea.sflag [#allocation8], %s1124
        %s1126 = sand.u32 %s307, 1
        %s1127 = smul.addr %s1126, 64
        %s1128 = scalar_lea.vmem [#allocation9], %s1127
        // Predicated region
        $region61: #{tpu_custom_call.1} parent=47 // pred_check
          %p1129 = pneg %p317
        $region62: #{tpu_custom_call.1} parent=47 // pred_check_branch
          %1131 = sbr.rel (%p1129) target = $region64
        $region63: #{tpu_custom_call.1} parent=47 // pred_region
          %s1132 = smul.u32 8, %s47
          %1134 = vsyncadd %s1125, 0
          %s1135 = smul.addr %s1132, 8
          %s1136 = scalar_lea.hbm %s10, %s1135
          %s1137 = sshll.u32 %s1128, 4
          %s1138 = int_to_ptr.vmem [resolvable:$true] %s1137
          %s1139 = sshll.u32 %s1136, 4
          %s1140 = int_to_ptr.hbm [resolvable:$true] %s1139
          %1145 = dma.vmem_to_hbm [thread:$0]  %s1138, 1024, %s1140, %s1125, 128, 128, 8
        $region64: #{tpu_custom_call.1} parent=47 // pred_fallthru
          _
      $region48: #{tpu_custom_call.1} parent=5 // pred_fallthru
        _
      %p1146 = scmp.le.s32.totalorder 2, %s38
      // Predicated region
      $region65: #{tpu_custom_call.1} parent=5 // pred_check
        %p1147 = pneg %p1146
      $region66: #{tpu_custom_call.1} parent=5 // pred_check_branch
        %1149 = sbr.rel (%p1147) target = $region68
      $region67: #{tpu_custom_call.1} parent=5 // pred_region
        %s1150 = ssub.s32 %s38, 2
        // Predicated region
        $region69: #{tpu_custom_call.1} parent=67 // pred_check
          %p1151 = pneg %p323
        $region70: #{tpu_custom_call.1} parent=67 // pred_check_branch
          %1153 = sbr.rel (%p1151) target = $region72
        $region71: #{tpu_custom_call.1} parent=67 // pred_region
          %s1154 = sand.u32 %s308, 1
          %s1155 = scalar_lea.sflag [#allocation8], %s1154
          %s1156 = sand.u32 %s308, 1
          %s1157 = smul.addr %s1156, 64
          %s1158 = scalar_lea.vmem [#allocation9], %s1157
          %1160 = dma.done %s1155, 1024
        $region72: #{tpu_custom_call.1} parent=67 // pred_fallthru
          _
      $region68: #{tpu_custom_call.1} parent=5 // pred_fallthru
        _
    $region6: #{tpu_custom_call.1} parent=1 // loop_footer
      %s42 = sadd.s32 1, %s38
    $region7: #{tpu_custom_call.1} parent=1 // loop_footer_branch
      %37 = sbr.rel target = $region3
    $region8: #{tpu_custom_call.1} parent=1 // loop_exit
      _
    %1161 = vsyncpa [#allocation7], 1
    %s1162 = scalar_lea.sflag [#allocation7], 1
    %1163 = vsyncpa %s1162, 1
    %1164 = vsyncpa [#allocation8], 1
    %s1165 = scalar_lea.sflag [#allocation8], 1
    %1166 = vsyncpa %s1165, 1

</llo_original>
